<compile_context>
chip_gen: v5e
topology: v5e:2x2
jax: 0.10.0
libtpu: 0.0.40
codegen_flags: <defaults>
</compile_context>

<pallas_src>
import jax
import jax.numpy as jnp
from jax.experimental import pallas as pl
from jax.experimental.pallas import tpu as pltpu


# ----------------------------------------------------------------------------
# Pallas kernel: fused per-sample critic forward for [q1; q2] + w-distance.
# ----------------------------------------------------------------------------
def make_wdist_kernel(num_hidden, tb, patches, matmul_dtype):
    inv_p = 1.0 / float(patches)

    def kernel(x_ref, w_ref, b_ref, wf_ref, out_ref):
        # x_ref  : (TB, 2P, c)   -- q1 rows then q2 rows, per sample
        # w_ref  : (TB, L, c, c) -- pre-transposed hidden weights (h @ Wt == h @ W^T)
        # b_ref  : (TB, L, c)
        # wf_ref : (TB, 1, c)
        # out_ref: (1, 8, 128)   -- lane t holds sample t's distance
        two_p = x_ref.shape[1]
        c = x_ref.shape[2]

        lane = jax.lax.broadcasted_iota(jnp.int32, (8, 128), 1)
        row = jax.lax.broadcasted_iota(jnp.int32, (two_p, c), 0)
        # +1/P for the q1 half, -1/P for the q2 half: folds the mean over
        # patches and the (m1 - m2) subtraction into one full reduce.
        sign = jnp.where(row < patches, inv_p, -inv_p).astype(jnp.float32)

        tile = jnp.zeros((8, 128), jnp.float32)
        for t in range(tb):                       # TB is small & static -> unrolled
            h = x_ref[t, :, :].astype(jnp.float32)            # (2P, c)
            for l in range(num_hidden):
                wt = w_ref[t, l, :, :]                        # (c, c)
                b = b_ref[t, l:l + 1, :]                      # (1, c)
                hd = jnp.dot(h.astype(matmul_dtype), wt.astype(matmul_dtype),
                             preferred_element_type=jnp.float32)
                h = jnp.maximum(hd + b, 0.0)                  # bias + ReLU in f32
            wf = wf_ref[t, :, :]                              # (1, c)
            d = jnp.abs(jnp.sum(h * wf * sign))               # |mean1 - mean2|
            tile = tile + jnp.where(lane == t, d, 0.0)
        out_ref[0] = tile                                     # full-tile unmasked store

    return kernel


def wasserstein_distance_pallas(q1, q2, params, *, tb=None, matmul_dtype=jnp.float32):
    """Evaluate the critic on q1, q2 and return |mean(proj1) - mean(proj2)| per sample.

    For realistic channel counts on v6e/v7x pass matmul_dtype=jnp.bfloat16
    (f32 accumulation is kept via preferred_element_type).
    """
    n, patches, c = q1.shape
    hidden = params["hidden"]          # list of (W [n,c,c], b [n,c])
    wf, _bf = params["final"]          # bf cancels exactly in |m1 - m2|
    num_hidden = len(hidden)
    assert num_hidden >= 1, "kernel assumes layers >= 2 (at least one hidden grouped conv)"

    # Samples per grid step: amortize per-step overhead but keep grid >= 2
    # so the batch axis shards across both v7x TensorCores.
    if tb is None:
        tb = max(1, min(8, n // 2)) if n >= 2 else 1
    num_blocks = pl.cdiv(n, tb)
    n_pad = num_blocks * tb

    # Fuse q1/q2 along patches -> one matmul per layer per sample.
    x = jnp.concatenate([q1, q2], axis=1).astype(jnp.float32)                    # (n, 2P, c)
    # Stack all hidden layers into single refs (pre-transposed for h @ Wt).
    # (If weights are reused across calls this stack/transpose could be cached.)
    w_stack = jnp.stack([jnp.transpose(W, (0, 2, 1)) for (W, _) in hidden],
                        axis=1).astype(jnp.float32)                              # (n, L, c, c)
    b_stack = jnp.stack([b for (_, b) in hidden], axis=1).astype(jnp.float32)    # (n, L, c)
    wf_r = wf.reshape(n, 1, c).astype(jnp.float32)                               # (n, 1, c)

    if n_pad != n:
        pad = n_pad - n
        x = jnp.pad(x, ((0, pad), (0, 0), (0, 0)))
        w_stack = jnp.pad(w_stack, ((0, pad), (0, 0), (0, 0), (0, 0)))
        b_stack = jnp.pad(b_stack, ((0, pad), (0, 0), (0, 0)))
        wf_r = jnp.pad(wf_r, ((0, pad), (0, 0), (0, 0)))

    two_p = 2 * patches
    flops = 2 * n_pad * two_p * c * (c * num_hidden + 1)
    bytes_accessed = 4 * (x.size + w_stack.size + b_stack.size + wf_r.size
                          + num_blocks * 8 * 128)

    out = pl.pallas_call(
        make_wdist_kernel(num_hidden, tb, patches, matmul_dtype),
        out_shape=jax.ShapeDtypeStruct((num_blocks, 8, 128), jnp.float32),
        grid=(num_blocks,),
        in_specs=[
            pl.BlockSpec((tb, two_p, c), lambda i: (i, 0, 0)),
            pl.BlockSpec((tb, num_hidden, c, c), lambda i: (i, 0, 0, 0)),
            pl.BlockSpec((tb, num_hidden, c), lambda i: (i, 0, 0)),
            pl.BlockSpec((tb, 1, c), lambda i: (i, 0, 0)),
        ],
        out_specs=pl.BlockSpec((1, 8, 128), lambda i: (i, 0, 0)),
        compiler_params=pltpu.CompilerParams(dimension_semantics=("parallel",)),
        cost_estimate=pl.CostEstimate(flops=int(flops), transcendentals=0,
                                      bytes_accessed=int(bytes_accessed)),
    )(x, w_stack, b_stack, wf_r)

    # Per-sample distances live in lanes 0..tb-1 of sublane 0 of each block.
    return out[:, 0, :tb].reshape(-1)[:n]


# ----------------------------------------------------------------------------
# Plain-JAX glue: critic init, differentiable critic (for the training loop),
# gradient penalty, and RMSprop optimizer steps (opt_steps).
# ----------------------------------------------------------------------------
def init_critic_params(key, in_dim, batch_size, layers):
    """MLP_D weights: Conv1d weights ~ N(0, 0.2), biases = 0 (weight_init())."""
    num_hidden = layers - 1
    hidden = []
    for _ in range(num_hidden):
        key, k = jax.random.split(key)
        W = 0.2 * jax.random.normal(k, (batch_size, in_dim, in_dim), dtype=jnp.float32)
        b = jnp.zeros((batch_size, in_dim), jnp.float32)
        hidden.append((W, b))
    key, k = jax.random.split(key)
    wf = 0.2 * jax.random.normal(k, (batch_size, in_dim), dtype=jnp.float32)
    bf = jnp.zeros((batch_size,), jnp.float32)
    return {"hidden": hidden, "final": (wf, bf)}


def critic_apply(params, x):
    """Pure-JAX replica of MLP_D.forward (needed for autodiff). x: [n, patches, c]."""
    h = x
    for (W, b) in params["hidden"]:
        h = jnp.einsum("npc,nkc->npk", h, W) + b[:, None, :]
        h = jax.nn.relu(h)
    wf, bf = params["final"]
    return jnp.einsum("npc,nc->np", h, wf) + bf[:, None]      # [n, patches]


def gradient_penalty_batch_jax(params, h_s, h_t, key):
    n, patches, _ = h_s.shape
    alpha = jax.random.uniform(key, (n, patches, 1), dtype=jnp.float32)
    interp = h_s + alpha * (h_t - h_s)
    grads = jax.grad(lambda x: critic_apply(params, x).sum())(interp)   # [n, patches, c]
    gnorm = jnp.sqrt(jnp.sum(grads * grads, axis=-1))                    # [n, patches]
    return jnp.mean((gnorm - 1.0) ** 2, axis=-1)                         # [n]


def train_critic(params, q1, q2, key, lr, opt_steps, gp_w):
    """RMSprop (PyTorch defaults: alpha=0.99, eps=1e-8) on -target + gp_w * gp."""
    # TODO(synk): optimizer loop / second-order autograd stays in plain JAX (no Pallas equivalent).
    def loss_fn(p, k):
        p1 = critic_apply(p, q1)
        p2 = critic_apply(p, q2)
        target = jnp.mean(jnp.abs(p1.mean(-1) - p2.mean(-1)))
        gp = jnp.mean(gradient_penalty_batch_jax(p, q1, q2, k))
        return -target + gp_w * gp

    sq_avg = jax.tree_util.tree_map(jnp.zeros_like, params)
    for _ in range(opt_steps):
        key, k = jax.random.split(key)
        grads = jax.grad(loss_fn)(params, k)
        sq_avg = jax.tree_util.tree_map(lambda s, g: 0.99 * s + 0.01 * g * g, sq_avg, grads)
        params = jax.tree_util.tree_map(
            lambda p, g, s: p - lr * g / (jnp.sqrt(s) + 1e-8), params, grads, sq_avg
        )
    return params


# ----------------------------------------------------------------------------
# Demo
# ----------------------------------------------------------------------------
if __name__ == "__main__":
    # small shapes consistent with the module's forward: q1, q2 are [n, patches, c]
    n, patches, c = 2, 8, 4
    layers = 4
    hidden_dim = 32          # unused by MLP_D, kept for fidelity with proj_net_args
    lr = 5e-5
    opt_steps = 3
    gp_w = 1000.0

    key = jax.random.PRNGKey(0)
    k_q1, k_q2, k_w, k_train = jax.random.split(key, 4)

    # gating-probability-like inputs (softmax over channel dim)
    q1 = jax.nn.softmax(jax.random.normal(k_q1, (n, patches, c), dtype=jnp.float32), axis=-1)
    q2 = jax.nn.softmax(jax.random.normal(k_q2, (n, patches, c), dtype=jnp.float32), axis=-1)

    # deterministic critic init (MLP_D: grouped 1x1 convs, weight ~ N(0,0.2), bias 0)
    params = init_critic_params(k_w, in_dim=c, batch_size=n, layers=layers)

    # inner wasserstein-critic training loop (plain JAX glue)
    params = train_critic(params, q1, q2, k_train, lr, opt_steps, gp_w)

    # final eval -> w_distance via the Pallas kernel
    w_distance = wasserstein_distance_pallas(q1, q2, params)
    w_distance = jax.block_until_ready(w_distance)

    # cross-check the Pallas kernel against the pure-JAX critic
    p1 = critic_apply(params, q1)
    p2 = critic_apply(params, q2)
    ref = jnp.abs(p1.mean(-1) - p2.mean(-1))
    assert w_distance.shape == (n,)
    assert jnp.allclose(w_distance, ref, rtol=1e-4, atol=1e-5), (w_distance, ref)

    print("KERNEL_OK")
</pallas_src>

<mosaic_0001>
module attributes {stable_mosaic.version = 11 : i64} {
  func.func @kernel(%arg0: i32, %arg1: memref<1x16x4xf32, #tpu.memory_space<vmem>>, %arg2: memref<1x3x4x4xf32, #tpu.memory_space<vmem>>, %arg3: memref<1x3x4xf32, #tpu.memory_space<vmem>>, %arg4: memref<1x1x4xf32, #tpu.memory_space<vmem>>, %arg5: memref<1x8x128xf32, #tpu.memory_space<vmem>>) attributes {dimension_semantics = [#tpu.dimension_semantics<parallel>], iteration_bounds = array<i64: 2>, scalar_prefetch = 0 : i64, scratch_operands = 0 : i64, tpu.core_type = #tpu.core_type<tc>, window_params = [{transform_indices = @transform_0, window_bounds = array<i64: 1, 16, 4>}, {transform_indices = @transform_1, window_bounds = array<i64: 1, 3, 4, 4>}, {transform_indices = @transform_2, window_bounds = array<i64: 1, 3, 4>}, {transform_indices = @transform_3, window_bounds = array<i64: 1, 1, 4>}, {transform_indices = @transform_4, window_bounds = array<i64: 1, 8, 128>}]} {
    %0 = tpu.iota {dimensions = array<i32: 1>} : vector<8x128xi32>
    %1 = tpu.iota {dimensions = array<i32: 0>} : vector<16x4xi32>
    %c8_i32 = arith.constant 8 : i32
    %2 = vector.broadcast %c8_i32 : i32 to vector<16x4xi32>
    %3 = arith.cmpi slt, %1, %2 : vector<16x4xi32>
    %cst = arith.constant 1.250000e-01 : f32
    %cst_0 = arith.constant -1.250000e-01 : f32
    %4 = vector.broadcast %cst : f32 to vector<16x4xf32>
    %5 = vector.broadcast %cst_0 : f32 to vector<16x4xf32>
    %6 = arith.select %3, %4, %5 : vector<16x4xi1>, vector<16x4xf32>
    %cst_1 = arith.constant 0.000000e+00 : f32
    %7 = vector.broadcast %cst_1 : f32 to vector<8x128xf32>
    %c0 = arith.constant 0 : index
    %c0_2 = arith.constant 0 : index
    %c0_3 = arith.constant 0 : index
    %8 = vector.load %arg1[%c0, %c0_2, %c0_3] : memref<1x16x4xf32, #tpu.memory_space<vmem>>, vector<1x16x4xf32>
    %9 = vector.shape_cast %8 : vector<1x16x4xf32> to vector<16x4xf32>
    %c0_4 = arith.constant 0 : index
    %c0_5 = arith.constant 0 : index
    %c0_6 = arith.constant 0 : index
    %c0_7 = arith.constant 0 : index
    %10 = vector.load %arg2[%c0_4, %c0_5, %c0_6, %c0_7] : memref<1x3x4x4xf32, #tpu.memory_space<vmem>>, vector<1x1x4x4xf32>
    %11 = vector.shape_cast %10 : vector<1x1x4x4xf32> to vector<4x4xf32>
    %c0_8 = arith.constant 0 : index
    %c0_9 = arith.constant 0 : index
    %c0_10 = arith.constant 0 : index
    %12 = vector.load %arg3[%c0_8, %c0_9, %c0_10] : memref<1x3x4xf32, #tpu.memory_space<vmem>>, vector<1x1x4xf32>
    %13 = vector.shape_cast %12 : vector<1x1x4xf32> to vector<1x4xf32>
    %cst_11 = arith.constant dense<0.000000e+00> : vector<16x4xf32>
    %14 = tpu.matmul %9, %11, %cst_11 {dimension_numbers = #tpu.dot_dimension_numbers<[1], [0], [0], [1], [0, 0, 1, 1], [], []>} : vector<16x4xf32>, vector<4x4xf32>, vector<16x4xf32> -> vector<16x4xf32>
    %15 = vector.broadcast %13 : vector<1x4xf32> to vector<16x4xf32>
    %16 = arith.addf %14, %15 : vector<16x4xf32>
    %cst_12 = arith.constant 0.000000e+00 : f32
    %17 = vector.broadcast %cst_12 : f32 to vector<16x4xf32>
    %18 = arith.maximumf %16, %17 : vector<16x4xf32>
    %c0_13 = arith.constant 0 : index
    %c1 = arith.constant 1 : index
    %c0_14 = arith.constant 0 : index
    %c0_15 = arith.constant 0 : index
    %19 = vector.load %arg2[%c0_13, %c1, %c0_14, %c0_15] : memref<1x3x4x4xf32, #tpu.memory_space<vmem>>, vector<1x1x4x4xf32>
    %20 = vector.shape_cast %19 : vector<1x1x4x4xf32> to vector<4x4xf32>
    %c0_16 = arith.constant 0 : index
    %c1_17 = arith.constant 1 : index
    %c0_18 = arith.constant 0 : index
    %21 = vector.load %arg3[%c0_16, %c1_17, %c0_18] : memref<1x3x4xf32, #tpu.memory_space<vmem>>, vector<1x1x4xf32>
    %22 = vector.shape_cast %21 : vector<1x1x4xf32> to vector<1x4xf32>
    %cst_19 = arith.constant dense<0.000000e+00> : vector<16x4xf32>
    %23 = tpu.matmul %18, %20, %cst_19 {dimension_numbers = #tpu.dot_dimension_numbers<[1], [0], [0], [1], [0, 0, 1, 1], [], []>} : vector<16x4xf32>, vector<4x4xf32>, vector<16x4xf32> -> vector<16x4xf32>
    %24 = vector.broadcast %22 : vector<1x4xf32> to vector<16x4xf32>
    %25 = arith.addf %23, %24 : vector<16x4xf32>
    %cst_20 = arith.constant 0.000000e+00 : f32
    %26 = vector.broadcast %cst_20 : f32 to vector<16x4xf32>
    %27 = arith.maximumf %25, %26 : vector<16x4xf32>
    %c0_21 = arith.constant 0 : index
    %c2 = arith.constant 2 : index
    %c0_22 = arith.constant 0 : index
    %c0_23 = arith.constant 0 : index
    %28 = vector.load %arg2[%c0_21, %c2, %c0_22, %c0_23] : memref<1x3x4x4xf32, #tpu.memory_space<vmem>>, vector<1x1x4x4xf32>
    %29 = vector.shape_cast %28 : vector<1x1x4x4xf32> to vector<4x4xf32>
    %c0_24 = arith.constant 0 : index
    %c2_25 = arith.constant 2 : index
    %c0_26 = arith.constant 0 : index
    %30 = vector.load %arg3[%c0_24, %c2_25, %c0_26] : memref<1x3x4xf32, #tpu.memory_space<vmem>>, vector<1x1x4xf32>
    %31 = vector.shape_cast %30 : vector<1x1x4xf32> to vector<1x4xf32>
    %cst_27 = arith.constant dense<0.000000e+00> : vector<16x4xf32>
    %32 = tpu.matmul %27, %29, %cst_27 {dimension_numbers = #tpu.dot_dimension_numbers<[1], [0], [0], [1], [0, 0, 1, 1], [], []>} : vector<16x4xf32>, vector<4x4xf32>, vector<16x4xf32> -> vector<16x4xf32>
    %33 = vector.broadcast %31 : vector<1x4xf32> to vector<16x4xf32>
    %34 = arith.addf %32, %33 : vector<16x4xf32>
    %cst_28 = arith.constant 0.000000e+00 : f32
    %35 = vector.broadcast %cst_28 : f32 to vector<16x4xf32>
    %36 = arith.maximumf %34, %35 : vector<16x4xf32>
    %c0_29 = arith.constant 0 : index
    %c0_30 = arith.constant 0 : index
    %c0_31 = arith.constant 0 : index
    %37 = vector.load %arg4[%c0_29, %c0_30, %c0_31] : memref<1x1x4xf32, #tpu.memory_space<vmem>>, vector<1x1x4xf32>
    %38 = vector.shape_cast %37 : vector<1x1x4xf32> to vector<1x4xf32>
    %39 = vector.broadcast %38 : vector<1x4xf32> to vector<16x4xf32>
    %40 = arith.mulf %36, %39 : vector<16x4xf32>
    %41 = arith.mulf %40, %6 : vector<16x4xf32>
    %42 = vector.shape_cast %41 : vector<16x4xf32> to vector<1x16x4xf32>
    %cst_32 = arith.constant dense<0.000000e+00> : vector<1xf32>
    %43 = vector.multi_reduction <add>, %42, %cst_32 [1, 2] : vector<1x16x4xf32> to vector<1xf32>
    %44 = vector.shape_cast %43 : vector<1xf32> to vector<1x1x1xf32>
    %45 = vector.extract %44[0, 0, 0] : f32 from vector<1x1x1xf32>
    %46 = math.absf %45 : f32
    %c0_i32 = arith.constant 0 : i32
    %47 = vector.broadcast %c0_i32 : i32 to vector<8x128xi32>
    %48 = arith.cmpi eq, %0, %47 : vector<8x128xi32>
    %cst_33 = arith.constant 0.000000e+00 : f32
    %49 = vector.broadcast %46 : f32 to vector<8x128xf32>
    %50 = vector.broadcast %cst_33 : f32 to vector<8x128xf32>
    %51 = arith.select %48, %49, %50 : vector<8x128xi1>, vector<8x128xf32>
    %52 = arith.addf %7, %51 : vector<8x128xf32>
    %c0_34 = arith.constant 0 : index
    %c0_35 = arith.constant 0 : index
    %c0_36 = arith.constant 0 : index
    %53 = vector.load %arg5[%c0_34, %c0_35, %c0_36] : memref<1x8x128xf32, #tpu.memory_space<vmem>>, vector<1x8x128xf32>
    %54 = vector.shape_cast %53 : vector<1x8x128xf32> to vector<8x128xf32>
    %55 = vector.shape_cast %52 : vector<8x128xf32> to vector<1x8x128xf32>
    tpu.vector_store %arg5[%c0_34, %c0_35, %c0_36], %55 {strides = array<i32>} : memref<1x8x128xf32, #tpu.memory_space<vmem>>, vector<1x8x128xf32>,
    return
  }
  func.func @transform_0(%arg0: i32) -> (i32, i32, i32) {
    %c0_i32 = arith.constant 0 : i32
    %c0_i32_0 = arith.constant 0 : i32
    %c0_i32_1 = arith.constant 0 : i32
    return %arg0, %c0_i32, %c0_i32_0 : i32, i32, i32
  }
  func.func @transform_1(%arg0: i32) -> (i32, i32, i32, i32) {
    %c0_i32 = arith.constant 0 : i32
    %c0_i32_0 = arith.constant 0 : i32
    %c0_i32_1 = arith.constant 0 : i32
    %c0_i32_2 = arith.constant 0 : i32
    return %arg0, %c0_i32, %c0_i32_0, %c0_i32_1 : i32, i32, i32, i32
  }
  func.func @transform_2(%arg0: i32) -> (i32, i32, i32) {
    %c0_i32 = arith.constant 0 : i32
    %c0_i32_0 = arith.constant 0 : i32
    %c0_i32_1 = arith.constant 0 : i32
    return %arg0, %c0_i32, %c0_i32_0 : i32, i32, i32
  }
  func.func @transform_3(%arg0: i32) -> (i32, i32, i32) {
    %c0_i32 = arith.constant 0 : i32
    %c0_i32_0 = arith.constant 0 : i32
    %c0_i32_1 = arith.constant 0 : i32
    return %arg0, %c0_i32, %c0_i32_0 : i32, i32, i32
  }
  func.func @transform_4(%arg0: i32) -> (i32, i32, i32) {
    %c0_i32 = arith.constant 0 : i32
    %c0_i32_0 = arith.constant 0 : i32
    %c0_i32_1 = arith.constant 0 : i32
    return %arg0, %c0_i32, %c0_i32_0 : i32, i32, i32
  }
}

</mosaic_0001>

<llo_original>
// kernel: tpu_custom_call.1
$region0: #{tpu_custom_call.1}
  #allocation0 [shape = 'u32[]', space=smem, size = 0x4, offset = 0x4, fixed_abs, tag = 'smem constant byte address 0x4 - core index']
  #allocation1 [shape = 'u32[72,128]{1,0:T(1,128)}', space=vmem, size = 0x9000, scoped, tag = 'internal scratch']
  %s0 = inlined_call_operand.vmem [shape: f32[2,16,4], index: 0, kind: input, shape index: {}]
  %s1 = inlined_call_operand.vmem [shape: f32[2,3,4,4], index: 1, kind: input, shape index: {}]
  %s2 = inlined_call_operand.vmem [shape: f32[2,3,4], index: 2, kind: input, shape index: {}]
  %s3 = inlined_call_operand.vmem [shape: f32[2,1,4], index: 3, kind: input, shape index: {}]
  %s4 = inlined_call_operand.hbm [shape: f32[2,8,128], index: 4, kind: output, shape index: {}]
  %s5 = sld [smem:[#allocation0]]
  $region49: #{tpu_custom_call.1} parent=0
    _
  %s7 = ssub.s32 1, %s5
  %s8 = scalar_select 0, %s7, %s5
  $region1: #{tpu_custom_call.1} parent=0
    #allocation2 [shape = 'u8[8192]{0}', space=vmem, size = 0x2000, scoped, tag = 'output window, operand 0']
    #allocation3 [shape = 's32[2]{0}', space=sflag, size = 0x8, scoped, tag = 'scoped memory for tpu_custom_call.1']
    %9 = vsyncpa [#allocation3], 0
    %s10 = scalar_lea.sflag [#allocation3], 1
    %11 = vsyncpa %s10, 0
    loop: start=0, step=1, limit=4
    $region2: #{tpu_custom_call.1} parent=1 // loop_pre_header
      _
    $region3: #{tpu_custom_call.1} parent=1 // loop_header
      %s13 = sphi 0, %s17
      %p14 = scmp.ge.s32.totalorder %s13, 4
      %s23 = sphi 0, %s25
      %s26 = sphi 0, %s23
      %s27 = sphi 0, %s26
      %s43 = sphi 0, %s27
      %s49 = sphi 0, %s51
      %s52 = sphi 0, %s49
      %s53 = sphi 0, %s52
      %s69 = sphi 0, %s53
      %s75 = sphi 0, %s77
      %s78 = sphi 0, %s75
      %s79 = sphi 0, %s78
      %s95 = sphi 0, %s79
      %s101 = sphi 0, %s103
      %s104 = sphi 0, %s101
      %s105 = sphi 0, %s104
      %s121 = sphi 0, %s105
      %s127 = sphi 0, %s129
      %s130 = sphi 0, %s127
      %s131 = sphi 0, %s130
      %s147 = sphi 0, %s131
    $region4: #{tpu_custom_call.1} parent=1 // loop_header_branch
      %16 = sbr.rel (%p14) target = $region8
    $region5: #{tpu_custom_call.1} parent=1 // loop_body
      %s18 = ssub.s32 %s13, 1
      %s19 = ssub.s32 %s13, 2
      %s20 = sadd.s32 %s13, 1
      %s21 = ssub.s32 %s13, %s20
      %p22 = scmp.eq.s32.totalorder %s21, 0
      %s24 = sadd.s32 %s23, 1
      %s25 = scalar_select %p22, %s23, %s24
      %p28 = pneg %p22
      %p29 = scmp.eq.s32.totalorder %s13, 1
      %p30 = por %p28, %p29
      %p31 = scmp.ne.s32.totalorder %s23, %s26
      %p32 = scmp.eq.s32.totalorder %s13, 0
      %p33 = por %p31, %p32
      %p34 = scmp.ne.s32.totalorder %s23, %s26
      %p35 = scmp.eq.s32.totalorder %s18, 1
      %p36 = por %p34, %p35
      %p37 = scmp.ne.s32.totalorder %s26, %s27
      %p38 = scmp.eq.s32.totalorder %s18, 0
      %p39 = por %p37, %p38
      %p40 = scmp.ne.s32.totalorder %s26, %s27
      %p41 = scmp.eq.s32.totalorder %s19, 1
      %p42 = por %p40, %p41
      %p44 = scmp.ne.s32.totalorder %s27, %s43
      %p45 = scmp.eq.s32.totalorder %s19, 0
      %p46 = por %p44, %p45
      %s47 = ssub.s32 %s13, %s20
      %p48 = scmp.eq.s32.totalorder %s47, 0
      %s50 = sadd.s32 %s49, 1
      %s51 = scalar_select %p48, %s49, %s50
      %p54 = pneg %p48
      %p55 = scmp.eq.s32.totalorder %s13, 1
      %p56 = por %p54, %p55
      %p57 = scmp.ne.s32.totalorder %s49, %s52
      %p58 = scmp.eq.s32.totalorder %s13, 0
      %p59 = por %p57, %p58
      %p60 = scmp.ne.s32.totalorder %s49, %s52
      %p61 = scmp.eq.s32.totalorder %s18, 1
      %p62 = por %p60, %p61
      %p63 = scmp.ne.s32.totalorder %s52, %s53
      %p64 = scmp.eq.s32.totalorder %s18, 0
      %p65 = por %p63, %p64
      %p66 = scmp.ne.s32.totalorder %s52, %s53
      %p67 = scmp.eq.s32.totalorder %s19, 1
      %p68 = por %p66, %p67
      %p70 = scmp.ne.s32.totalorder %s53, %s69
      %p71 = scmp.eq.s32.totalorder %s19, 0
      %p72 = por %p70, %p71
      %s73 = ssub.s32 %s13, %s20
      %p74 = scmp.eq.s32.totalorder %s73, 0
      %s76 = sadd.s32 %s75, 1
      %s77 = scalar_select %p74, %s75, %s76
      %p80 = pneg %p74
      %p81 = scmp.eq.s32.totalorder %s13, 1
      %p82 = por %p80, %p81
      %p83 = scmp.ne.s32.totalorder %s75, %s78
      %p84 = scmp.eq.s32.totalorder %s13, 0
      %p85 = por %p83, %p84
      %p86 = scmp.ne.s32.totalorder %s75, %s78
      %p87 = scmp.eq.s32.totalorder %s18, 1
      %p88 = por %p86, %p87
      %p89 = scmp.ne.s32.totalorder %s78, %s79
      %p90 = scmp.eq.s32.totalorder %s18, 0
      %p91 = por %p89, %p90
      %p92 = scmp.ne.s32.totalorder %s78, %s79
      %p93 = scmp.eq.s32.totalorder %s19, 1
      %p94 = por %p92, %p93
      %p96 = scmp.ne.s32.totalorder %s79, %s95
      %p97 = scmp.eq.s32.totalorder %s19, 0
      %p98 = por %p96, %p97
      %s99 = ssub.s32 %s13, %s20
      %p100 = scmp.eq.s32.totalorder %s99, 0
      %s102 = sadd.s32 %s101, 1
      %s103 = scalar_select %p100, %s101, %s102
      %p106 = pneg %p100
      %p107 = scmp.eq.s32.totalorder %s13, 1
      %p108 = por %p106, %p107
      %p109 = scmp.ne.s32.totalorder %s101, %s104
      %p110 = scmp.eq.s32.totalorder %s13, 0
      %p111 = por %p109, %p110
      %p112 = scmp.ne.s32.totalorder %s101, %s104
      %p113 = scmp.eq.s32.totalorder %s18, 1
      %p114 = por %p112, %p113
      %p115 = scmp.ne.s32.totalorder %s104, %s105
      %p116 = scmp.eq.s32.totalorder %s18, 0
      %p117 = por %p115, %p116
      %p118 = scmp.ne.s32.totalorder %s104, %s105
      %p119 = scmp.eq.s32.totalorder %s19, 1
      %p120 = por %p118, %p119
      %p122 = scmp.ne.s32.totalorder %s105, %s121
      %p123 = scmp.eq.s32.totalorder %s19, 0
      %p124 = por %p122, %p123
      %s125 = ssub.s32 %s13, %s20
      %p126 = scmp.eq.s32.totalorder %s125, 0
      %s128 = sadd.s32 %s127, 1
      %s129 = scalar_select %p126, %s127, %s128
      %p132 = pneg %p126
      %p133 = scmp.eq.s32.totalorder %s13, 1
      %p134 = por %p132, %p133
      %p135 = scmp.ne.s32.totalorder %s127, %s130
      %p136 = scmp.eq.s32.totalorder %s13, 0
      %p137 = por %p135, %p136
      %p138 = scmp.ne.s32.totalorder %s127, %s130
      %p139 = scmp.eq.s32.totalorder %s18, 1
      %p140 = por %p138, %p139
      %p141 = scmp.ne.s32.totalorder %s130, %s131
      %p142 = scmp.eq.s32.totalorder %s18, 0
      %p143 = por %p141, %p142
      %p144 = scmp.ne.s32.totalorder %s130, %s131
      %p145 = scmp.eq.s32.totalorder %s19, 1
      %p146 = por %p144, %p145
      %p148 = scmp.ne.s32.totalorder %s131, %s147
      %p149 = scmp.eq.s32.totalorder %s19, 0
      %p150 = por %p148, %p149
      %p151 = scmp.le.s32.totalorder 1, %s13
      %p152 = scmp.lt.s32.totalorder %s13, 3
      %p153 = pnand %p151, %p152
      %p154 = pneg %p153
      // Predicated region
      $region9: #{tpu_custom_call.1} parent=5 // pred_check
        _
      $region10: #{tpu_custom_call.1} parent=5 // pred_check_branch
        %156 = sbr.rel (%p153) target = $region12
      $region11: #{tpu_custom_call.1} parent=5 // pred_region
        %s157 = ssub.s32 %s13, 1
      $region12: #{tpu_custom_call.1} parent=5 // pred_fallthru
        _
      %p158 = scmp.lt.s32.totalorder %s13, 2
      // Predicated region
      $region13: #{tpu_custom_call.1} parent=5 // pred_check
        %p159 = pneg %p158
      $region14: #{tpu_custom_call.1} parent=5 // pred_check_branch
        %161 = sbr.rel (%p159) target = $region16
      $region15: #{tpu_custom_call.1} parent=5 // pred_region
        // Predicated region
        $region17: #{tpu_custom_call.1} parent=15 // pred_check
          %p162 = pneg %p33
        $region18: #{tpu_custom_call.1} parent=15 // pred_check_branch
          %164 = sbr.rel (%p162) target = $region20
        $region19: #{tpu_custom_call.1} parent=15 // pred_region
          %p165 = scmp.lt.s32.totalorder %s13, 1
          %s166 = scalar_select %p165, %s13, 1
          %s167 = smul.addr %s166, 2
          %s168 = smul.addr %s167, 8
          %s169 = scalar_lea.vmem %s0, %s168
        $region20: #{tpu_custom_call.1} parent=15 // pred_fallthru
          _
        // Predicated region
        $region21: #{tpu_custom_call.1} parent=15 // pred_check
          %p170 = pneg %p59
        $region22: #{tpu_custom_call.1} parent=15 // pred_check_branch
          %172 = sbr.rel (%p170) target = $region24
        $region23: #{tpu_custom_call.1} parent=15 // pred_region
          %p173 = scmp.lt.s32.totalorder %s13, 1
          %s174 = scalar_select %p173, %s13, 1
          %s175 = smul.addr %s174, 3
          %s176 = smul.addr %s175, 4
          %s177 = scalar_lea.vmem %s1, %s176
        $region24: #{tpu_custom_call.1} parent=15 // pred_fallthru
          _
        // Predicated region
        $region25: #{tpu_custom_call.1} parent=15 // pred_check
          %p178 = pneg %p85
        $region26: #{tpu_custom_call.1} parent=15 // pred_check_branch
          %180 = sbr.rel (%p178) target = $region28
        $region27: #{tpu_custom_call.1} parent=15 // pred_region
          %p181 = scmp.lt.s32.totalorder %s13, 1
          %s182 = scalar_select %p181, %s13, 1
          %s183 = smul.addr %s182, 4
          %s184 = scalar_lea.vmem %s2, %s183
        $region28: #{tpu_custom_call.1} parent=15 // pred_fallthru
          _
        // Predicated region
        $region29: #{tpu_custom_call.1} parent=15 // pred_check
          %p185 = pneg %p111
        $region30: #{tpu_custom_call.1} parent=15 // pred_check_branch
          %187 = sbr.rel (%p185) target = $region32
        $region31: #{tpu_custom_call.1} parent=15 // pred_region
          %p188 = scmp.lt.s32.totalorder %s13, 1
          %s189 = scalar_select %p188, %s13, 1
          %s190 = scalar_lea.vmem %s3, %s189
        $region32: #{tpu_custom_call.1} parent=15 // pred_fallthru
          _
      $region16: #{tpu_custom_call.1} parent=5 // pred_fallthru
        _
      %p191 = scmp.le.s32.totalorder 1, %s13
      %p192 = scmp.lt.s32.totalorder %s13, 3
      %p193 = pnand %p191, %p192
      %p194 = pneg %p193
      // Predicated region
      $region33: #{tpu_custom_call.1} parent=5 // pred_check
        _
      $region34: #{tpu_custom_call.1} parent=5 // pred_check_branch
        %196 = sbr.rel (%p193) target = $region36
      $region35: #{tpu_custom_call.1} parent=5 // pred_region
        %s197 = ssub.s32 %s13, 1
        %p198 = scmp.lt.s32.totalorder %s18, 1
        %s199 = scalar_select %p198, %s18, 1
        %s200 = smul.addr %s199, 2
        %s201 = smul.addr %s200, 8
        %s202 = scalar_lea.vmem %s0, %s201
        %p203 = pneg %p39
        %p204 = pneg %p36
        %p205 = scmp.lt.s32.totalorder %s18, 1
        %s206 = scalar_select %p205, %s18, 1
        %s207 = smul.addr %s206, 3
        %s208 = smul.addr %s207, 4
        %s209 = scalar_lea.vmem %s1, %s208
        %p210 = pneg %p65
        %p211 = pneg %p62
        %p212 = scmp.lt.s32.totalorder %s18, 1
        %s213 = scalar_select %p212, %s18, 1
        %s214 = smul.addr %s213, 4
        %s215 = scalar_lea.vmem %s2, %s214
        %p216 = pneg %p91
        %p217 = pneg %p88
        %p218 = scmp.lt.s32.totalorder %s18, 1
        %s219 = scalar_select %p218, %s18, 1
        %s220 = scalar_lea.vmem %s3, %s219
        %p221 = pneg %p117
        %p222 = pneg %p114
        %p223 = pneg %p143
        %p224 = pneg %p140
        %s225 = sand.u32 %s130, 1
        %s226 = scalar_lea.sflag [#allocation3], %s225
        %s227 = sand.u32 %s130, 1
        %s228 = smul.addr %s227, 8
        %s229 = scalar_lea.vmem [#allocation2], %s228
        %p230 = scmp.lt.s32.totalorder %s18, 1
        %s231 = scalar_select %p230, %s18, 1
        %s232 = smul.addr %s231, 2
        %s233 = smul.addr %s232, 8
        %s234 = scalar_lea.vmem %s0, %s233
        %p235 = scmp.lt.s32.totalorder %s18, 1
        %s236 = scalar_select %p235, %s18, 1
        %s237 = smul.addr %s236, 3
        %s238 = smul.addr %s237, 4
        %s239 = scalar_lea.vmem %s1, %s238
        %p240 = scmp.lt.s32.totalorder %s18, 1
        %s241 = scalar_select %p240, %s18, 1
        %s242 = smul.addr %s241, 4
        %s243 = scalar_lea.vmem %s2, %s242
        %p244 = scmp.lt.s32.totalorder %s18, 1
        %s245 = scalar_select %p244, %s18, 1
        %s246 = scalar_lea.vmem %s3, %s245
        %v247 = vlaneseq
        %v248 = vand.u32 %v247, 127
        %v249 = vlaneseq
        %v250 = vshrl.u32 %v249, 7
        %v251 = vadd.s32 %v250, 8
        %vm252 = vcmp.lt.s32.totalorder %v250, 8
        %vm253 = vcmp.lt.s32.totalorder %v251, 8
        %v254 = vsel %vm252, 0.125, -0.125
        %v255 = vsel %vm253, 0.125, -0.125
        %v256 = vld [vmem:[%s234] sm:$0xff]
        %v257 = vld [vmem:[%s234 + $0x8] sm:$0xff]
        %v258 = vld [vmem:[%s239] sm:$0xf]
        %v259 = vld [vmem:[%s243] sm:$0x1]
        %v260 = vperm.slane %v259, 0
        %vm261 = vcmask 31744
        %v263 = vsel %vm261, %v256, 0
        %v266 = vsel %vm261, %v257, 0
        %vm268 = vcmask 1043456
        %v270 = vsel %vm268, %v258, 0
        %272 = vmatpush.msra.mxu0 0.0
        %273 = vmatpush.msra.mxu0 0.0
        %274 = vmatpush.msra.mxu0 0.0
        %275 = vmatpush.msra.mxu0 0.0
        %276 = vmatpush.msra.mxu0 0.0
        %277 = vmatpush.msra.mxu0 0.0
        %278 = vmatpush.msra.mxu0 0.0
        %279 = vmatpush.msra.mxu0 0.0
        %280 = vmatpush.msra.mxu0 0.0
        %281 = vmatpush.msra.mxu0 0.0
        %282 = vmatpush.msra.mxu0 0.0
        %283 = vmatpush.msra.mxu0 0.0
        %284 = vmatpush.msra.mxu0 0.0
        %285 = vmatpush.msra.mxu0 0.0
        %286 = vmatpush.msra.mxu0 0.0
        %287 = vmatpush.msra.mxu0 %v270
        %288 = vmatmul.f32.gmra.mxu0 %v263
        %v289 = vpop.f32.mrf.mxu0
        %v290 = vadd.f32 %v260, %v289
        %291 = vmatmul.f32.gmra.mxu0 %v266
        %v292 = vpop.f32.mrf.mxu0
        %v293 = vadd.f32 %v260, %v292
        %294 = vdwg.mxu0
        %v295 = vmax.f32 %v290, 0.0
        %v296 = vmax.f32 %v293, 0.0
        %s297 = scalar_lea.vmem %s239, 4
        %v298 = vld [vmem:[%s297] sm:$0xf]
        %v299 = vld [vmem:[%s243 + $0x1] sm:$0x1]
        %v300 = vperm.slane %v299, 0
        %v302 = vsel %vm261, %v295, 0
        %v305 = vsel %vm261, %v296, 0
        %v308 = vsel %vm268, %v298, 0
        %310 = vmatpush.msra.mxu0 0.0
        %311 = vmatpush.msra.mxu0 0.0
        %312 = vmatpush.msra.mxu0 0.0
        %313 = vmatpush.msra.mxu0 0.0
        %314 = vmatpush.msra.mxu0 0.0
        %315 = vmatpush.msra.mxu0 0.0
        %316 = vmatpush.msra.mxu0 0.0
        %317 = vmatpush.msra.mxu0 0.0
        %318 = vmatpush.msra.mxu0 0.0
        %319 = vmatpush.msra.mxu0 0.0
        %320 = vmatpush.msra.mxu0 0.0
        %321 = vmatpush.msra.mxu0 0.0
        %322 = vmatpush.msra.mxu0 0.0
        %323 = vmatpush.msra.mxu0 0.0
        %324 = vmatpush.msra.mxu0 0.0
        %325 = vmatpush.msra.mxu0 %v308
        %326 = vmatmul.f32.gmra.mxu0 %v302
        %v327 = vpop.f32.mrf.mxu0
        %v328 = vadd.f32 %v300, %v327
        %329 = vmatmul.f32.gmra.mxu0 %v305
        %v330 = vpop.f32.mrf.mxu0
        %v331 = vadd.f32 %v300, %v330
        %332 = vdwg.mxu0
        %v333 = vmax.f32 %v328, 0.0
        %v334 = vmax.f32 %v331, 0.0
        %s335 = scalar_lea.vmem %s239, 8
        %v336 = vld [vmem:[%s335] sm:$0xf]
        %v337 = vld [vmem:[%s243 + $0x2] sm:$0x1]
        %v338 = vperm.slane %v337, 0
        %v340 = vsel %vm261, %v333, 0
        %v343 = vsel %vm261, %v334, 0
        %v346 = vsel %vm268, %v336, 0
        %348 = vmatpush.msra.mxu0 0.0
        %349 = vmatpush.msra.mxu0 0.0
        %350 = vmatpush.msra.mxu0 0.0
        %351 = vmatpush.msra.mxu0 0.0
        %352 = vmatpush.msra.mxu0 0.0
        %353 = vmatpush.msra.mxu0 0.0
        %354 = vmatpush.msra.mxu0 0.0
        %355 = vmatpush.msra.mxu0 0.0
        %356 = vmatpush.msra.mxu0 0.0
        %357 = vmatpush.msra.mxu0 0.0
        %358 = vmatpush.msra.mxu0 0.0
        %359 = vmatpush.msra.mxu0 0.0
        %360 = vmatpush.msra.mxu0 0.0
        %361 = vmatpush.msra.mxu0 0.0
        %362 = vmatpush.msra.mxu0 0.0
        %363 = vmatpush.msra.mxu0 %v346
        %364 = vmatmul.f32.gmra.mxu0 %v340
        %v365 = vpop.f32.mrf.mxu0
        %v366 = vadd.f32 %v338, %v365
        %367 = vmatmul.f32.gmra.mxu0 %v343
        %v368 = vpop.f32.mrf.mxu0
        %v369 = vadd.f32 %v338, %v368
        %370 = vdwg.mxu0
        %v371 = vmax.f32 %v366, 0.0
        %v372 = vmax.f32 %v369, 0.0
        %v373 = vld [vmem:[%s246] sm:$0x1]
        %v375 = vperm.slane %v373, 0
        %v377 = vmul.f32 %v371, %v375
        %v378 = vmul.f32 %v372, %v375
        %v379 = vmul.f32 %v377, %v254
        %v380 = vmul.f32 %v378, %v255
        %v381 = vsel %vm261, %v379, 0.0
        %v382 = vsel %vm261, %v380, 0.0
        %v383 = vadd.f32 %v381, %v382
        %384 = vadd.xlane.f32.xlu0 %v383
        %v385 = vpop.xlane.xlu0 %384
        %v386 = vrot.slane %v385, 4
        %v387 = vadd.f32 %v385, %v386
        %v388 = vrot.slane %v387, 2
        %v389 = vadd.f32 %v387, %v388
        %v390 = vrot.slane %v389, 1
        %v391 = vadd.f32 %v389, %v390
        %s392 = vtos %v391
        %s393 = sand.u32 2147483647, %s392
        %vm394 = vcmp.eq.s32.totalorder %v248, 0
        %v395 = vstv %s393
        %v396 = vsel %vm394, %v395, 0.0
        %v397 = vadd.f32 %v396, 0.0
        %398 = vst [vmem:[%s229] sm:$0xff] %v397
        %s399 = sand.u32 %s130, 1
        %s400 = scalar_lea.sflag [#allocation3], %s399
        %s401 = sand.u32 %s130, 1
        %s402 = smul.addr %s401, 8
        %s403 = scalar_lea.vmem [#allocation2], %s402
        // Predicated region
        $region37: #{tpu_custom_call.1} parent=35 // pred_check
          %p404 = pneg %p140
        $region38: #{tpu_custom_call.1} parent=35 // pred_check_branch
          %406 = sbr.rel (%p404) target = $region40
        $region39: #{tpu_custom_call.1} parent=35 // pred_region
          %408 = vsyncadd %s400, 0
          %s409 = smul.addr %s18, 8
          %s410 = scalar_lea.hbm %s4, %s409
          %s412 = sshll.u32 %s403, 4
          %s413 = int_to_ptr.vmem [resolvable:$true] %s412
          %s414 = sshll.u32 %s410, 4
          %s415 = int_to_ptr.hbm [resolvable:$true] %s414
          %417 = dma.vmem_to_hbm [thread:$0]  %s413, 128, %s415, %s400
        $region40: #{tpu_custom_call.1} parent=35 // pred_fallthru
          _
      $region36: #{tpu_custom_call.1} parent=5 // pred_fallthru
        _
      %p418 = scmp.le.s32.totalorder 2, %s13
      // Predicated region
      $region41: #{tpu_custom_call.1} parent=5 // pred_check
        %p419 = pneg %p418
      $region42: #{tpu_custom_call.1} parent=5 // pred_check_branch
        %421 = sbr.rel (%p419) target = $region44
      $region43: #{tpu_custom_call.1} parent=5 // pred_region
        %s422 = ssub.s32 %s13, 2
        // Predicated region
        $region45: #{tpu_custom_call.1} parent=43 // pred_check
          %p423 = pneg %p146
        $region46: #{tpu_custom_call.1} parent=43 // pred_check_branch
          %425 = sbr.rel (%p423) target = $region48
        $region47: #{tpu_custom_call.1} parent=43 // pred_region
          %s426 = sand.u32 %s131, 1
          %s427 = scalar_lea.sflag [#allocation3], %s426
          %s428 = sand.u32 %s131, 1
          %s429 = smul.addr %s428, 8
          %s430 = scalar_lea.vmem [#allocation2], %s429
          %432 = dma.done %s427, 128
        $region48: #{tpu_custom_call.1} parent=43 // pred_fallthru
          _
      $region44: #{tpu_custom_call.1} parent=5 // pred_fallthru
        _
    $region6: #{tpu_custom_call.1} parent=1 // loop_footer
      %s17 = sadd.s32 1, %s13
    $region7: #{tpu_custom_call.1} parent=1 // loop_footer_branch
      %12 = sbr.rel target = $region3
    $region8: #{tpu_custom_call.1} parent=1 // loop_exit
      _
    %433 = vsyncpa [#allocation3], 1
    %s434 = scalar_lea.sflag [#allocation3], 1
    %435 = vsyncpa %s434, 1

</llo_original>
